<compile_context>
chip_gen: v5e
topology: v5e:2x2
jax: 0.10.0
libtpu: 0.0.40
codegen_flags: <defaults>
</compile_context>

<pallas_src>
import functools
import math

import jax
import jax.numpy as jnp
from jax.experimental import pallas as pl
from jax.experimental.pallas import tpu as pltpu

LANE = 128
SUB = 8
# 2048 rows * 128 lanes * 4 B = 1 MiB per f32 input block;
# x2 inputs x2 pipeline buffers = 4 MiB VMEM -> safe on v5e/v6e/v7x.
MAX_BLOCK_ROWS = 2048


def _iou_loss_kernel(o_ref, t_ref, loss_ref, acc_ref, *,
                     mode, eps, activation, hard_thresh, total,
                     block_rows, need_mask):
    i = pl.program_id(0)

    @pl.when(i == 0)
    def _init():
        acc_ref[...] = jnp.zeros_like(acc_ref)

    o = o_ref[...].astype(jnp.float32)
    t = t_ref[...].astype(jnp.float32)

    if mode == "hard":
        # For activation='sigmoid', hard_thresh = logit(threshold) so that
        # (sigmoid(o) > threshold) == (o > hard_thresh): strict inequality is
        # preserved and the per-element sigmoid (EUP) disappears entirely.
        # For activation='none'/'softmax2d', hard_thresh is the raw threshold.
        p = (o > hard_thresh).astype(jnp.float32)
    else:  # 'soft'
        p = jax.nn.sigmoid(o) if activation == "sigmoid" else o

    if need_mask:
        # Mask out pad elements / unspecified out-of-bounds rows of the last
        # block by global element index (row-level math, no int32 overflow).
        full_rows = total // LANE
        rem = total % LANE
        r = jax.lax.broadcasted_iota(jnp.int32, (block_rows, LANE), 0) \
            + i * block_rows
        c = jax.lax.broadcasted_iota(jnp.int32, (block_rows, LANE), 1)
        valid = (r < full_rows) | ((r == full_rows) & (c < rem))
        p = jnp.where(valid, p, 0.0)
        t = jnp.where(valid, t, 0.0)

    # Steady-state: reduce only over the leading (vreg-group) axis -> pure
    # VALU adds into one (8,128) vreg per quantity, no lane/sublane crossing.
    acc_ref[0] += jnp.sum((p * t).reshape(-1, SUB, LANE), axis=0)
    acc_ref[1] += jnp.sum((p + t).reshape(-1, SUB, LANE), axis=0)

    @pl.when(i == pl.num_programs(0) - 1)
    def _finish():
        inter = jnp.sum(acc_ref[0], keepdims=True)   # (1, 1)
        sums = jnp.sum(acc_ref[1], keepdims=True)    # (1, 1)
        union = sums - inter
        loss_ref[...] = 1.0 - (inter + eps) / (union + eps)


def iou_loss(outputs, targets, *, mode: str = "hard", eps: float = 1e-7,
             threshold: float = 0.5, activation: str = "sigmoid"):
    """Pallas implementation of catalyst IoULoss.forward (returns a scalar)."""
    assert mode in ("hard", "soft")
    assert activation in ("none", "sigmoid", "softmax2d")
    assert outputs.shape == targets.shape

    if activation == "softmax2d":
        # glue: channel-softmax needs NCHW structure, applied before flattening.
        outputs = jax.nn.softmax(outputs, axis=1)
        activation = "none"

    if mode == "hard":
        if activation == "sigmoid":
            if threshold <= 0.0:
                hard_thresh = -math.inf   # sigmoid(o) in (0,1) -> always > thr
            elif threshold >= 1.0:
                hard_thresh = math.inf    # never > thr
            else:
                hard_thresh = math.log(threshold / (1.0 - threshold))
        else:
            hard_thresh = float(threshold)
    else:
        hard_thresh = 0.0  # unused in soft mode

    o = outputs.reshape(-1)   # keep original dtype; cast happens in-kernel
    t = targets.reshape(-1)
    total = o.shape[0]

    # Align to whole (8,128) tiles. For typical tensor sizes this is a no-op
    # (pure metadata reshape, no extra HBM pass); when padding is required the
    # pad values are irrelevant because the kernel masks by element index.
    chunk = SUB * LANE
    padded = pl.cdiv(total, chunk) * chunk
    if padded != total:
        o = jnp.pad(o, (0, padded - total))
        t = jnp.pad(t, (0, padded - total))
    rows = padded // LANE

    o2 = o.reshape(rows, LANE)
    t2 = t.reshape(rows, LANE)

    block_rows = min(MAX_BLOCK_ROWS, rows)   # rows is a multiple of 8
    grid = pl.cdiv(rows, block_rows)
    need_mask = (padded != total) or (rows % block_rows != 0)

    kernel = functools.partial(
        _iou_loss_kernel, mode=mode, eps=float(eps), activation=activation,
        hard_thresh=hard_thresh, total=total, block_rows=block_rows,
        need_mask=need_mask)

    loss = pl.pallas_call(
        kernel,
        out_shape=jax.ShapeDtypeStruct((1, 1), jnp.float32),
        grid_spec=pltpu.PrefetchScalarGridSpec(
            num_scalar_prefetch=0,
            grid=(grid,),
            in_specs=[
                pl.BlockSpec((block_rows, LANE), lambda i: (i, 0)),
                pl.BlockSpec((block_rows, LANE), lambda i: (i, 0)),
            ],
            out_specs=pl.BlockSpec((1, 1), lambda i: (0, 0)),
            scratch_shapes=[
                # [0] = running intersection, [1] = running sum(p)+sum(t)
                pltpu.VMEM((2, SUB, LANE), jnp.float32),
            ],
        ),
        compiler_params=pltpu.CompilerParams(
            dimension_semantics=("arbitrary",),
            vmem_limit_bytes=32 * 1024 * 1024),
    )(o2, t2)
    return loss[0, 0]


def _reference_iou_loss(outputs, targets, *, eps=1e-7, threshold=0.5):
    p = jax.nn.sigmoid(outputs.astype(jnp.float32))
    p = (p > threshold).astype(jnp.float32)
    t = targets.astype(jnp.float32)
    inter = jnp.sum(t * p)
    union = jnp.sum(t) + jnp.sum(p)
    return 1.0 - (inter + eps) / (union - inter + eps)


if __name__ == "__main__":
    key = jax.random.PRNGKey(0)
    k1, k2, k3, k4 = jax.random.split(key, 4)

    # NCHW, small shapes (aligned case: 2*4*16*16 = 2048 elements)
    outputs = jax.random.normal(k1, (2, 4, 16, 16), dtype=jnp.float32)
    targets = (jax.random.uniform(k2, (2, 4, 16, 16)) > 0.5).astype(jnp.float32)

    loss = jax.block_until_ready(iou_loss(outputs, targets))
    ref = jax.block_until_ready(_reference_iou_loss(outputs, targets))
    assert jnp.isfinite(loss), "non-finite loss"
    assert abs(float(loss) - float(ref)) < 1e-5, (float(loss), float(ref))

    # Unaligned shape to exercise the in-kernel masking path (2*4*15*17 = 2040)
    outputs2 = jax.random.normal(k3, (2, 4, 15, 17), dtype=jnp.float32)
    targets2 = (jax.random.uniform(k4, (2, 4, 15, 17)) > 0.5).astype(jnp.float32)

    loss2 = jax.block_until_ready(iou_loss(outputs2, targets2))
    ref2 = jax.block_until_ready(_reference_iou_loss(outputs2, targets2))
    assert jnp.isfinite(loss2), "non-finite loss (masked path)"
    assert abs(float(loss2) - float(ref2)) < 1e-5, (float(loss2), float(ref2))

    print("KERNEL_OK")
</pallas_src>

<mosaic_0001>
module attributes {stable_mosaic.version = 11 : i64} {
  func.func @_iou_loss_kernel(%arg0: i32, %arg1: memref<16x128xf32, #tpu.memory_space<vmem>>, %arg2: memref<16x128xf32, #tpu.memory_space<vmem>>, %arg3: memref<1x1xf32, #tpu.memory_space<vmem>>, %arg4: memref<2x8x128xf32, #tpu.memory_space<vmem>>) attributes {dimension_semantics = [#tpu.dimension_semantics<arbitrary>], iteration_bounds = array<i64: 1>, scalar_prefetch = 0 : i64, scratch_operands = 1 : i64, tpu.core_type = #tpu.core_type<tc>, window_params = [{transform_indices = @transform_0, window_bounds = array<i64: 16, 128>}, {transform_indices = @transform_1, window_bounds = array<i64: 16, 128>}, {pipeline_mode = #tpu.pipeline_mode<synchronous>, transform_indices = @transform_2, window_bounds = array<i64: 1, 1>}]} {
    %c0_i32 = arith.constant 0 : i32
    %0 = arith.cmpi eq, %arg0, %c0_i32 : i32
    %1 = arith.extui %0 : i1 to i32
    %c0_i32_0 = arith.constant 0 : i32
    %2 = arith.cmpi ne, %1, %c0_i32_0 : i32
    scf.if %2 {
      %cst_19 = arith.constant 0.000000e+00 : f32
      %30 = vector.broadcast %cst_19 : f32 to vector<2x8x128xf32>
      %c0_20 = arith.constant 0 : index
      %c0_21 = arith.constant 0 : index
      %c0_22 = arith.constant 0 : index
      %31 = vector.load %arg4[%c0_20, %c0_21, %c0_22] : memref<2x8x128xf32, #tpu.memory_space<vmem>>, vector<2x8x128xf32>
      tpu.vector_store %arg4[%c0_20, %c0_21, %c0_22], %30 {strides = array<i32>} : memref<2x8x128xf32, #tpu.memory_space<vmem>>, vector<2x8x128xf32>,
    } else {
    }
    %c0 = arith.constant 0 : index
    %c0_1 = arith.constant 0 : index
    %3 = vector.load %arg1[%c0, %c0_1] : memref<16x128xf32, #tpu.memory_space<vmem>>, vector<16x128xf32>
    %c0_2 = arith.constant 0 : index
    %c0_3 = arith.constant 0 : index
    %4 = vector.load %arg2[%c0_2, %c0_3] : memref<16x128xf32, #tpu.memory_space<vmem>>, vector<16x128xf32>
    %cst = arith.constant 0.000000e+00 : f32
    %5 = vector.broadcast %cst : f32 to vector<16x128xf32>
    %6 = arith.cmpf ogt, %3, %5 : vector<16x128xf32>
    %7 = arith.extui %6 : vector<16x128xi1> to vector<16x128xi32>
    %8 = arith.sitofp %7 : vector<16x128xi32> to vector<16x128xf32>
    %c0_4 = arith.constant 0 : index
    %c0_5 = arith.constant 0 : index
    %c0_6 = arith.constant 0 : index
    %9 = vector.load %arg4[%c0_4, %c0_5, %c0_6] : memref<2x8x128xf32, #tpu.memory_space<vmem>>, vector<1x8x128xf32>
    %10 = vector.shape_cast %9 : vector<1x8x128xf32> to vector<8x128xf32>
    %11 = arith.mulf %8, %4 : vector<16x128xf32>
    %12 = vector.shape_cast %11 : vector<16x128xf32> to vector<2x8x128xf32>
    %cst_7 = arith.constant dense<0.000000e+00> : vector<8x128xf32>
    %13 = vector.multi_reduction <add>, %12, %cst_7 [0] : vector<2x8x128xf32> to vector<8x128xf32>
    %14 = arith.addf %10, %13 : vector<8x128xf32>
    %c0_8 = arith.constant 0 : index
    %c0_9 = arith.constant 0 : index
    %c0_10 = arith.constant 0 : index
    %15 = vector.load %arg4[%c0_8, %c0_9, %c0_10] : memref<2x8x128xf32, #tpu.memory_space<vmem>>, vector<1x8x128xf32>
    %16 = vector.shape_cast %15 : vector<1x8x128xf32> to vector<8x128xf32>
    %17 = vector.shape_cast %14 : vector<8x128xf32> to vector<1x8x128xf32>
    tpu.vector_store %arg4[%c0_8, %c0_9, %c0_10], %17 {strides = array<i32>} : memref<2x8x128xf32, #tpu.memory_space<vmem>>, vector<1x8x128xf32>,
    %c1 = arith.constant 1 : index
    %c0_11 = arith.constant 0 : index
    %c0_12 = arith.constant 0 : index
    %18 = vector.load %arg4[%c1, %c0_11, %c0_12] : memref<2x8x128xf32, #tpu.memory_space<vmem>>, vector<1x8x128xf32>
    %19 = vector.shape_cast %18 : vector<1x8x128xf32> to vector<8x128xf32>
    %20 = arith.addf %8, %4 : vector<16x128xf32>
    %21 = vector.shape_cast %20 : vector<16x128xf32> to vector<2x8x128xf32>
    %cst_13 = arith.constant dense<0.000000e+00> : vector<8x128xf32>
    %22 = vector.multi_reduction <add>, %21, %cst_13 [0] : vector<2x8x128xf32> to vector<8x128xf32>
    %23 = arith.addf %19, %22 : vector<8x128xf32>
    %c1_14 = arith.constant 1 : index
    %c0_15 = arith.constant 0 : index
    %c0_16 = arith.constant 0 : index
    %24 = vector.load %arg4[%c1_14, %c0_15, %c0_16] : memref<2x8x128xf32, #tpu.memory_space<vmem>>, vector<1x8x128xf32>
    %25 = vector.shape_cast %24 : vector<1x8x128xf32> to vector<8x128xf32>
    %26 = vector.shape_cast %23 : vector<8x128xf32> to vector<1x8x128xf32>
    tpu.vector_store %arg4[%c1_14, %c0_15, %c0_16], %26 {strides = array<i32>} : memref<2x8x128xf32, #tpu.memory_space<vmem>>, vector<1x8x128xf32>,
    %c0_i32_17 = arith.constant 0 : i32
    %27 = arith.cmpi eq, %arg0, %c0_i32_17 : i32
    %28 = arith.extui %27 : i1 to i32
    %c0_i32_18 = arith.constant 0 : i32
    %29 = arith.cmpi ne, %28, %c0_i32_18 : i32
    scf.if %29 {
      %c0_19 = arith.constant 0 : index
      %c0_20 = arith.constant 0 : index
      %c0_21 = arith.constant 0 : index
      %30 = vector.load %arg4[%c0_19, %c0_20, %c0_21] : memref<2x8x128xf32, #tpu.memory_space<vmem>>, vector<1x8x128xf32>
      %31 = vector.shape_cast %30 : vector<1x8x128xf32> to vector<8x128xf32>
      %32 = vector.shape_cast %31 : vector<8x128xf32> to vector<1x8x128xf32>
      %cst_22 = arith.constant dense<0.000000e+00> : vector<1xf32>
      %33 = vector.multi_reduction <add>, %32, %cst_22 [1, 2] : vector<1x8x128xf32> to vector<1xf32>
      %34 = vector.shape_cast %33 : vector<1xf32> to vector<1x1x1xf32>
      %35 = vector.extract %34[0, 0, 0] : f32 from vector<1x1x1xf32>
      %36 = vector.broadcast %35 : f32 to vector<1x1xf32>
      %c1_23 = arith.constant 1 : index
      %c0_24 = arith.constant 0 : index
      %c0_25 = arith.constant 0 : index
      %37 = vector.load %arg4[%c1_23, %c0_24, %c0_25] : memref<2x8x128xf32, #tpu.memory_space<vmem>>, vector<1x8x128xf32>
      %38 = vector.shape_cast %37 : vector<1x8x128xf32> to vector<8x128xf32>
      %39 = vector.shape_cast %38 : vector<8x128xf32> to vector<1x8x128xf32>
      %cst_26 = arith.constant dense<0.000000e+00> : vector<1xf32>
      %40 = vector.multi_reduction <add>, %39, %cst_26 [1, 2] : vector<1x8x128xf32> to vector<1xf32>
      %41 = vector.shape_cast %40 : vector<1xf32> to vector<1x1x1xf32>
      %42 = vector.extract %41[0, 0, 0] : f32 from vector<1x1x1xf32>
      %43 = vector.broadcast %42 : f32 to vector<1x1xf32>
      %44 = arith.subf %43, %36 : vector<1x1xf32>
      %cst_27 = arith.constant 1.000000e-07 : f32
      %45 = vector.broadcast %cst_27 : f32 to vector<1x1xf32>
      %46 = arith.addf %36, %45 : vector<1x1xf32>
      %cst_28 = arith.constant 1.000000e-07 : f32
      %47 = vector.broadcast %cst_28 : f32 to vector<1x1xf32>
      %48 = arith.addf %44, %47 : vector<1x1xf32>
      %49 = arith.divf %46, %48 : vector<1x1xf32>
      %cst_29 = arith.constant 1.000000e+00 : f32
      %50 = vector.broadcast %cst_29 : f32 to vector<1x1xf32>
      %51 = arith.subf %50, %49 : vector<1x1xf32>
      %c0_30 = arith.constant 0 : index
      %c0_31 = arith.constant 0 : index
      %52 = vector.load %arg3[%c0_30, %c0_31] : memref<1x1xf32, #tpu.memory_space<vmem>>, vector<1x1xf32>
      tpu.vector_store %arg3[%c0_30, %c0_31], %51 {strides = array<i32>} : memref<1x1xf32, #tpu.memory_space<vmem>>, vector<1x1xf32>,
    } else {
    }
    return
  }
  func.func @transform_0(%arg0: i32) -> (i32, i32) {
    %c0_i32 = arith.constant 0 : i32
    %c0_i32_0 = arith.constant 0 : i32
    return %arg0, %c0_i32 : i32, i32
  }
  func.func @transform_1(%arg0: i32) -> (i32, i32) {
    %c0_i32 = arith.constant 0 : i32
    %c0_i32_0 = arith.constant 0 : i32
    return %arg0, %c0_i32 : i32, i32
  }
  func.func @transform_2(%arg0: i32) -> (i32, i32) {
    %c0_i32 = arith.constant 0 : i32
    %c0_i32_0 = arith.constant 0 : i32
    %c0_i32_1 = arith.constant 0 : i32
    return %c0_i32, %c0_i32_0 : i32, i32
  }
}

</mosaic_0001>

<llo_original>
// kernel: tpu_custom_call.1
$region0: #{tpu_custom_call.1}
  #allocation0 [shape = 'u32[]', space=smem, size = 0x4, offset = 0x4, fixed_abs, tag = 'smem constant byte address 0x4 - core index']
  #allocation1 [shape = 'u32[72,128]{1,0:T(1,128)}', space=vmem, size = 0x9000, scoped, tag = 'internal scratch']
  #allocation2 [shape = 'f32[2,8,128]{2,1,0:T(8,128)}', space=vmem, size = 0x2000, scoped, tag = 'scratch operand']
  %s0 = inlined_call_operand.hbm [shape: f32[16,128], index: 0, kind: input, shape index: {}]
  %s1 = inlined_call_operand.hbm [shape: f32[16,128], index: 1, kind: input, shape index: {}]
  %s2 = inlined_call_operand.hbm [shape: f32[1,1], index: 2, kind: output, shape index: {}]
  %s3 = sld [smem:[#allocation0]]
  $region34: #{tpu_custom_call.1} parent=0
    _
  %s5 = ssub.s32 1, %s3
  %s6 = scalar_select 0, %s5, %s3
  $region1: #{tpu_custom_call.1} parent=0
    #allocation3 [shape = 'u8[8192]{0}', space=vmem, size = 0x2000, scoped, tag = 'input window, operand 0, single buffered']
    #allocation4 [shape = 's32[1]{0}', space=sflag, size = 0x4, scoped, tag = 'scoped memory for tpu_custom_call.1']
    #allocation5 [shape = 's32[1]{0}', space=sflag, size = 0x4, scoped, tag = 'scoped memory for tpu_custom_call.1']
    #allocation6 [shape = 'u8[8192]{0}', space=vmem, size = 0x2000, scoped, tag = 'input window, operand 1, single buffered']
    #allocation7 [shape = 's32[1]{0}', space=sflag, size = 0x4, scoped, tag = 'scoped memory for tpu_custom_call.1']
    #allocation8 [shape = 'u8[512]{0}', space=vmem, size = 0x400, scoped, tag = 'output window, operand 0, single buffered']
    %7 = vsyncpa [#allocation4], 0
    %8 = vsyncpa [#allocation7], 0
    %9 = vsyncpa [#allocation5], 0
    // Predicated region
    $region2: #{tpu_custom_call.1} parent=1 // pred_check
      _
    $region3: #{tpu_custom_call.1} parent=1 // pred_check_branch
      %11 = sbr.rel (0) target = $region5
    $region4: #{tpu_custom_call.1} parent=1 // pred_region
      %13 = vsyncadd [#allocation4], 0
      %s14 = sshll.u32 %s0, 4
      %s15 = int_to_ptr.hbm [resolvable:$true] %s14
      %s16 = sshll.u32 [#allocation3], 4
      %s17 = int_to_ptr.vmem [resolvable:$true] %s16
      %22 = dma.hbm_to_vmem [thread:$0]  %s15, 256, %s17, [#allocation4], 128, 128, 8
    $region5: #{tpu_custom_call.1} parent=1 // pred_fallthru
      _
    // Predicated region
    $region6: #{tpu_custom_call.1} parent=1 // pred_check
      _
    $region7: #{tpu_custom_call.1} parent=1 // pred_check_branch
      %24 = sbr.rel (0) target = $region9
    $region8: #{tpu_custom_call.1} parent=1 // pred_region
      %26 = vsyncadd [#allocation7], 0
      %s27 = sshll.u32 %s1, 4
      %s28 = int_to_ptr.hbm [resolvable:$true] %s27
      %s29 = sshll.u32 [#allocation6], 4
      %s30 = int_to_ptr.vmem [resolvable:$true] %s29
      %35 = dma.hbm_to_vmem [thread:$0]  %s28, 256, %s30, [#allocation7], 128, 128, 8
    $region9: #{tpu_custom_call.1} parent=1 // pred_fallthru
      _
    // Predicated region
    $region10: #{tpu_custom_call.1} parent=1 // pred_check
      _
    $region11: #{tpu_custom_call.1} parent=1 // pred_check_branch
      %37 = sbr.rel (0) target = $region13
    $region12: #{tpu_custom_call.1} parent=1 // pred_region
      %39 = dma.done [#allocation4], 256
    $region13: #{tpu_custom_call.1} parent=1 // pred_fallthru
      _
    // Predicated region
    $region14: #{tpu_custom_call.1} parent=1 // pred_check
      _
    $region15: #{tpu_custom_call.1} parent=1 // pred_check_branch
      %41 = sbr.rel (0) target = $region17
    $region16: #{tpu_custom_call.1} parent=1 // pred_region
      %43 = dma.done [#allocation7], 256
    $region17: #{tpu_custom_call.1} parent=1 // pred_fallthru
      _
    %p44 = scmp.eq.s32.totalorder 0, 0
    // Predicated region
    $region18: #{tpu_custom_call.1} parent=1 // pred_check
      %p45 = pneg %p44
    $region19: #{tpu_custom_call.1} parent=1 // pred_check_branch
      %47 = sbr.rel (%p45) target = $region21
    $region20: #{tpu_custom_call.1} parent=1 // pred_region
      %48 = vst [vmem:[#allocation2] sm:$0xff] 0.0
      %49 = vst [vmem:[#allocation2 + $0x8] sm:$0xff] 0.0
    $region21: #{tpu_custom_call.1} parent=1 // pred_fallthru
      _
    %v50 = vld [vmem:[#allocation3] sm:$0xff]
    %v51 = vld [vmem:[#allocation3 + $0x8] sm:$0xff]
    %v52 = vld [vmem:[#allocation6] sm:$0xff]
    %v53 = vld [vmem:[#allocation6 + $0x8] sm:$0xff]
    %vm54 = vcmp.gt.f32.partialorder %v50, 0.0
    %vm55 = vcmp.gt.f32.partialorder %v51, 0.0
    %v56 = vsel %vm54, 1, 0
    %v57 = vsel %vm55, 1, 0
    %v58 = vcvt.s32.f32 %v56
    %v59 = vcvt.s32.f32 %v57
    %v60 = vld [vmem:[#allocation2] sm:$0xff]
    %v61 = vmul.f32 %v58, %v52
    %v62 = vmul.f32 %v59, %v53
    %v63 = vadd.f32 %v61, %v62
    %v64 = vadd.f32 %v60, %v63
    %65 = vst [vmem:[#allocation2] sm:$0xff] %v64
    %s66 = scalar_lea.vmem [#allocation2], 8
    %v67 = vld [vmem:[%s66] sm:$0xff]
    %v68 = vadd.f32 %v58, %v52
    %v69 = vadd.f32 %v59, %v53
    %v70 = vadd.f32 %v68, %v69
    %v71 = vadd.f32 %v67, %v70
    %72 = vst [vmem:[%s66] sm:$0xff] %v71
    // Predicated region
    $region22: #{tpu_custom_call.1} parent=1 // pred_check
      %p73 = pneg %p44
    $region23: #{tpu_custom_call.1} parent=1 // pred_check_branch
      %75 = sbr.rel (%p73) target = $region25
    $region24: #{tpu_custom_call.1} parent=1 // pred_region
      %v76 = vld [vmem:[#allocation2] sm:$0xff]
      %77 = vadd.xlane.f32.xlu0 %v76
      %v78 = vpop.xlane.xlu0 %77
      %v79 = vrot.slane %v78, 4
      %v80 = vadd.f32 %v78, %v79
      %v81 = vrot.slane %v80, 2
      %v82 = vadd.f32 %v80, %v81
      %v83 = vrot.slane %v82, 1
      %v84 = vadd.f32 %v82, %v83
      %s85 = vtos %v84
      %v86 = vstv %s85
      %v87 = vld [vmem:[%s66] sm:$0xff]
      %88 = vadd.xlane.f32.xlu0 %v87
      %v89 = vpop.xlane.xlu0 %88
      %v90 = vrot.slane %v89, 4
      %v91 = vadd.f32 %v89, %v90
      %v92 = vrot.slane %v91, 2
      %v93 = vadd.f32 %v91, %v92
      %v94 = vrot.slane %v93, 1
      %v95 = vadd.f32 %v93, %v94
      %s96 = vtos %v95
      %v97 = vstv %s96
      %v98 = vsub.f32 %v97, %v86
      %v99 = vadd.f32 %v86, 1e-07
      %v100 = vadd.f32 %v98, 1e-07
      %v101 = vrcp.pop %v100
      %v102 = vmul.f32 %v100, %v101
      %v103 = vsub.f32 1.0, %v102
      %v104 = vmul.f32 %v101, %v103
      %v105 = vadd.f32 %v101, %v104
      %vm106 = vweird.f32 %v100
      %vm107 = vweird.f32 %v101
      %vm108 = vmor %vm106, %vm107
      %v109 = vsel %vm108, %v101, %v105
      %v110 = vand.u32 2147483647, %v100
      %vm111 = vcmp.eq.f32.partialorder %v110, 8.507059e+37
      %v112 = vand.u32 %v100, 2147483648
      %v113 = vor.u32 1.1754944e-38, %v112
      %v114 = vsel %vm111, %v113, %v109
      %v115 = vmul.f32 %v99, %v114
      %v116 = vsub.f32 1.0, %v115
      %vm117 = vcmask 0
      %118 = vst.msk [vmem:[#allocation8] sm:$0x1] %vm117, %v116
    $region25: #{tpu_custom_call.1} parent=1 // pred_fallthru
      _
    // Predicated region
    $region26: #{tpu_custom_call.1} parent=1 // pred_check
      _
    $region27: #{tpu_custom_call.1} parent=1 // pred_check_branch
      %120 = sbr.rel (0) target = $region29
    $region28: #{tpu_custom_call.1} parent=1 // pred_region
      %122 = vsyncadd [#allocation5], 0
      %s124 = sshll.u32 [#allocation8], 4
      %s125 = int_to_ptr.vmem [resolvable:$true] %s124
      %s126 = sshll.u32 %s2, 4
      %s127 = int_to_ptr.hbm [resolvable:$true] %s126
      %129 = dma.vmem_to_hbm [thread:$0]  %s125, 16, %s127, [#allocation5]
    $region29: #{tpu_custom_call.1} parent=1 // pred_fallthru
      _
    // Predicated region
    $region30: #{tpu_custom_call.1} parent=1 // pred_check
      _
    $region31: #{tpu_custom_call.1} parent=1 // pred_check_branch
      %131 = sbr.rel (0) target = $region33
    $region32: #{tpu_custom_call.1} parent=1 // pred_region
      %133 = dma.done [#allocation5], 16
    $region33: #{tpu_custom_call.1} parent=1 // pred_fallthru
      _
    %134 = vsyncpa [#allocation4], 1
    %135 = vsyncpa [#allocation7], 1
    %136 = vsyncpa [#allocation5], 1

</llo_original>
